<compile_context>
chip_gen: v7x
topology: tpu7x:2x2x1
jax: 0.10.0
libtpu: 0.0.40
codegen_flags: <defaults>
</compile_context>

<pallas_src>
import jax
import jax.numpy as jnp
from jax import lax
from jax.experimental import pallas as pl
from jax.experimental.pallas import tpu as pltpu


# -----------------------------------------------------------------------------
# Agent.forward -- identity.
# -----------------------------------------------------------------------------
def agent_forward(obs: jax.Array) -> jax.Array:
    """Exact semantics of Agent.forward: return obs unchanged (no kernel)."""
    return obs


def _copy_kernel(x_ref, o_ref):
    o_ref[...] = x_ref[...]


def _tile_rows(num_rows: int, row_bytes: int, *,
               target_tile_bytes: int = 2 << 20,
               footprint_cap_bytes: int = 12 << 20,
               split_threshold_bytes: int = 1 << 20) -> int:
    """Row tile (multiple of 8) for a pipelined 2-D copy.

    ~2 MiB per tile puts each DMA in the ~85%-of-HBM-roofline range; the
    (in + out) x double-buffer footprint (4x the tile) stays <= 8 MiB, inside
    every generation's default scoped VMEM (v5e 16 MiB, v6e/v7x 32 MiB).  For
    inputs >= split_threshold the tile is capped at ~half the rows so the
    "parallel" grid has >= 2 steps and both v7x TensorCores participate.
    """
    total_bytes = num_rows * row_bytes
    if num_rows <= 8:
        return num_rows
    per_tile = min(target_tile_bytes, footprint_cap_bytes // 4)
    rows = max(8, (per_tile // row_bytes) // 8 * 8)
    if total_bytes >= split_threshold_bytes:
        half = max(8, (num_rows // 2) // 8 * 8)
        rows = min(rows, half)
    return min(rows, num_rows)


def _copy_pallas_2d(x: jax.Array) -> jax.Array:
    R, C = x.shape
    tb = _tile_rows(R, C * x.dtype.itemsize)
    return pl.pallas_call(
        _copy_kernel,
        out_shape=jax.ShapeDtypeStruct((R, C), x.dtype),
        grid=(pl.cdiv(R, tb),),
        in_specs=[pl.BlockSpec((tb, C), lambda i: (i, 0))],
        out_specs=pl.BlockSpec((tb, C), lambda i: (i, 0)),
        compiler_params=pltpu.CompilerParams(
            dimension_semantics=("parallel",)),
    )(x)


def agent_forward_pallas(obs: jax.Array) -> jax.Array:
    """Identity through an explicit Pallas kernel boundary.

    Prefer `agent_forward` (no kernel, no HBM traffic); use this only when a
    compilation boundary is strictly required.
    """
    B, D = obs.shape
    n = B * D
    if n % 128 == 0:
        # Lane-dense view: full 128-lane vregs and unmasked stores even when
        # the observation dim is skinny (D < 128).
        out = _copy_pallas_2d(obs.reshape(n // 128, 128))
    else:
        # TODO(synk): non-128-divisible sizes keep the original (B, D) layout;
        # the trailing lanes of each store are masked when D % 128 != 0.
        out = _copy_pallas_2d(obs)
    return out.reshape(B, D)


# -----------------------------------------------------------------------------
# _compile_cost finalization:  rews[rews != rews] = -1e6 ; rews.mean(dim=1)
# -----------------------------------------------------------------------------
def _cost_finalize_kernel(w_ref, rews_t_ref, out_ref):
    r = rews_t_ref[...]                                    # (npart, tn) block
    r = jnp.where(jnp.isnan(r), jnp.asarray(-1e6, dtype=r.dtype), r)
    # Canonical (1, npart) x (npart, tn) MXU matvec; 1/npart is folded into
    # the weight row, so the (1, tn) output is lane-dense and divide-free.
    out_ref[...] = lax.dot_general(
        w_ref[...], r,
        dimension_numbers=(((1,), (0,)), ((), ())),
        preferred_element_type=jnp.float32,
    )


def _pick_tn(nopt: int) -> int:
    if nopt < 128:
        return nopt                      # single block == full array dims
    # Bounded 128-multiple tile: predictable VMEM for any CEM popsize, >= 2
    # "parallel" grid steps for typical nopt (both v7x TCs), and the partial
    # last tile is handled by Pallas store masking.
    return min(512, max(128, (nopt // 2) // 128 * 128))


def compile_cost_finalize(rews: jax.Array, *, tn: int | None = None) -> jax.Array:
    """NaN-mask + per-candidate mean over particles: (nopt, npart) -> (nopt,).

    Implements `rews[rews != rews] = -1e6; rews.mean(dim=1)` from
    Agent._compile_cost.  The kernel consumes rews transposed to
    (npart, nopt); a rollout that produces that layout directly should skip
    the wrapper transpose (and, ideally, fuse this finalization into its own
    per-step reward-accumulation kernel -- see TODO below).
    """
    nopt, npart = rews.shape
    if tn is None:
        tn = _pick_tn(nopt)
    # bf16 stays bf16 (VPU mask + native bf16 MXU feed on v6e/v7x, f32
    # accumulate); everything else is computed in f32.
    compute_dtype = rews.dtype if rews.dtype == jnp.bfloat16 else jnp.float32
    rews_t = rews.astype(compute_dtype).T                  # (npart, nopt)
    w = jnp.full((1, npart), 1.0 / npart, dtype=compute_dtype)
    out = pl.pallas_call(
        _cost_finalize_kernel,
        out_shape=jax.ShapeDtypeStruct((1, nopt), jnp.float32),
        grid=(pl.cdiv(nopt, tn),),
        in_specs=[pl.BlockSpec((1, npart), lambda i: (0, 0)),     # hoisted weights
                  pl.BlockSpec((npart, tn), lambda i: (0, i))],
        out_specs=pl.BlockSpec((1, tn), lambda i: (0, i)),
        compiler_params=pltpu.CompilerParams(
            dimension_semantics=("parallel",)),
    )(w, rews_t)
    return out[0]


# TODO(synk): the full _compile_cost rollout requires the external
# forw_dyna_set[i].infer / dyna.infer dynamics networks, the numpy CEM
# optimizer and the host-side detect_done logic, none of which are part of
# this nn.Module's forward; only the in-module tensor math is implemented.
# When the rollout is ported, fuse this NaN-mask + mean into the per-step
# reward-accumulation kernel (the whole op is ~100 KB of data, so a
# standalone launch is overhead-dominated).


if __name__ == "__main__":
    key = jax.random.PRNGKey(0)
    k1, k2, k3, k4 = jax.random.split(key, 4)

    # --- Agent.forward: identity -------------------------------------------
    obs = jax.random.normal(k1, (8, 32), dtype=jnp.float32)
    out = jax.block_until_ready(agent_forward(obs))
    assert out.shape == obs.shape and out.dtype == obs.dtype
    assert bool(jnp.array_equal(out, obs))

    # Explicit kernel boundary: lane-dense (B*D//128, 128) path, single tile.
    out_k = jax.block_until_ready(agent_forward_pallas(obs))
    assert out_k.shape == obs.shape and out_k.dtype == obs.dtype
    assert bool(jnp.array_equal(out_k, obs))

    # Bigger input (1 MiB): lane-dense view + >= 2 parallel grid steps.
    obs_big = jax.random.normal(k2, (4096, 64), dtype=jnp.float32)
    out_big = jax.block_until_ready(agent_forward_pallas(obs_big))
    assert bool(jnp.array_equal(out_big, obs_big))

    # --- _compile_cost finalization ------------------------------------------
    def ref_finalize(r):
        rf = jnp.where(jnp.isnan(r), jnp.asarray(-1e6, dtype=r.dtype), r)
        return jnp.mean(rf.astype(jnp.float32), axis=1)

    nopt, npart = 500, 50          # module defaults: popsize=500, npart=50
    rews = jax.random.normal(k3, (nopt, npart), dtype=jnp.float32)
    rews = rews.at[0, 0].set(jnp.nan)
    rews = rews.at[17, 3].set(jnp.nan)
    rews = rews.at[nopt - 1, npart - 1].set(jnp.nan)
    cost = jax.block_until_ready(compile_cost_finalize(rews))
    assert cost.shape == (nopt,)
    assert bool(jnp.allclose(cost, ref_finalize(rews), rtol=1e-5, atol=1e-2))

    # bf16 input: masked in bf16, native bf16 MXU feed, f32 accumulation.
    rews16 = jax.random.normal(k4, (256, npart), dtype=jnp.bfloat16)
    rews16 = rews16.at[3, 7].set(jnp.nan)
    cost16 = jax.block_until_ready(compile_cost_finalize(rews16))
    assert cost16.shape == (256,)
    assert bool(jnp.allclose(cost16, ref_finalize(rews16), rtol=2e-2, atol=25.0))

    print("KERNEL_OK")
</pallas_src>

<mosaic_0001>
module attributes {stable_mosaic.version = 11 : i64} {
  func.func @_copy_kernel(%arg0: i32, %arg1: memref<2x128xf32, #tpu.memory_space<vmem>>, %arg2: memref<2x128xf32, #tpu.memory_space<vmem>>) attributes {dimension_semantics = [#tpu.dimension_semantics<parallel>], iteration_bounds = array<i64: 1>, scalar_prefetch = 0 : i64, scratch_operands = 0 : i64, tpu.core_type = #tpu.core_type<tc>, window_params = [{transform_indices = @transform_0, window_bounds = array<i64: 2, 128>}, {transform_indices = @transform_1, window_bounds = array<i64: 2, 128>}]} {
    %c0 = arith.constant 0 : index
    %c0_0 = arith.constant 0 : index
    %0 = vector.load %arg1[%c0, %c0_0] : memref<2x128xf32, #tpu.memory_space<vmem>>, vector<2x128xf32>
    %c0_1 = arith.constant 0 : index
    %c0_2 = arith.constant 0 : index
    %1 = vector.load %arg2[%c0_1, %c0_2] : memref<2x128xf32, #tpu.memory_space<vmem>>, vector<2x128xf32>
    tpu.vector_store %arg2[%c0_1, %c0_2], %0 {strides = array<i32>} : memref<2x128xf32, #tpu.memory_space<vmem>>, vector<2x128xf32>,
    return
  }
  func.func @transform_0(%arg0: i32) -> (i32, i32) {
    %c0_i32 = arith.constant 0 : i32
    %c0_i32_0 = arith.constant 0 : i32
    return %arg0, %c0_i32 : i32, i32
  }
  func.func @transform_1(%arg0: i32) -> (i32, i32) {
    %c0_i32 = arith.constant 0 : i32
    %c0_i32_0 = arith.constant 0 : i32
    return %arg0, %c0_i32 : i32, i32
  }
}

</mosaic_0001>

<llo_original>
// kernel: tpu_custom_call.1
$region0: #{tpu_custom_call.1}
  #allocation0 [shape = 'u32[]', space=smem, size = 0x4, offset = 0x4, fixed_abs, tag = 'smem constant byte address 0x4 - core index']
  #allocation1 [shape = 'u32[144,128]{1,0:T(1,128)}', space=vmem, size = 0x12000, scoped, tag = 'internal scratch']
  %s0 = inlined_call_operand.hbm [shape: f32[2,128], index: 0, kind: input, shape index: {}]
  %s1 = inlined_call_operand.hbm [shape: f32[2,128], index: 1, kind: output, shape index: {}]
  %s2 = sld [smem:[#allocation0]]
  $region18: #{tpu_custom_call.1} parent=0
    _
  %s4 = ssub.s32 1, %s2
  %s5 = scalar_select 0, %s4, %s2
  $region1: #{tpu_custom_call.1} parent=0
    #allocation2 [shape = 'u8[1024]{0}', space=vmem, size = 0x400, scoped, tag = 'input window, operand 0, single buffered']
    #allocation3 [shape = 's32[1]{0}', space=sflag, size = 0x4, scoped, tag = 'scoped memory for tpu_custom_call.1']
    #allocation4 [shape = 's32[1]{0}', space=sflag, size = 0x4, scoped, tag = 'scoped memory for tpu_custom_call.1']
    #allocation5 [shape = 'u8[1024]{0}', space=vmem, size = 0x400, scoped, tag = 'output window, operand 0, single buffered']
    %6 = vsyncpa [#allocation3], 0
    %7 = vsyncpa [#allocation4], 0
    // Predicated region
    $region2: #{tpu_custom_call.1} parent=1 // pred_check
      _
    $region3: #{tpu_custom_call.1} parent=1 // pred_check_branch
      %9 = sbr.rel (0) target = $region5
    $region4: #{tpu_custom_call.1} parent=1 // pred_region
      %s11 = ssub.s32 32, 32
      %12 = vsyncadd [#allocation3], %s11
      %s14 = sshll.u32 [#allocation2], 4
      %s15 = int_to_ptr.vmem [resolvable:$true] %s14
      %17 = dma.hbm_to_vmem [thread:$0]  %s0, 32, %s15, [#allocation3]
    $region5: #{tpu_custom_call.1} parent=1 // pred_fallthru
      _
    // Predicated region
    $region6: #{tpu_custom_call.1} parent=1 // pred_check
      _
    $region7: #{tpu_custom_call.1} parent=1 // pred_check_branch
      %19 = sbr.rel (0) target = $region9
    $region8: #{tpu_custom_call.1} parent=1 // pred_region
      %20 = dma.done [#allocation3], 32
    $region9: #{tpu_custom_call.1} parent=1 // pred_fallthru
      _
    %v21 = vld [vmem:[#allocation2] sm:$0x3]
    %22 = vst [vmem:[#allocation5] sm:$0x3] %v21
    // Predicated region
    $region10: #{tpu_custom_call.1} parent=1 // pred_check
      _
    $region11: #{tpu_custom_call.1} parent=1 // pred_check_branch
      %24 = sbr.rel (0) target = $region13
    $region12: #{tpu_custom_call.1} parent=1 // pred_region
      %s26 = ssub.s32 32, 32
      %27 = vsyncadd [#allocation4], %s26
      %s29 = sshll.u32 [#allocation5], 4
      %s30 = int_to_ptr.vmem [resolvable:$true] %s29
      %32 = dma.vmem_to_hbm [thread:$0]  %s30, 32, %s1, [#allocation4]
    $region13: #{tpu_custom_call.1} parent=1 // pred_fallthru
      _
    // Predicated region
    $region14: #{tpu_custom_call.1} parent=1 // pred_check
      _
    $region15: #{tpu_custom_call.1} parent=1 // pred_check_branch
      %34 = sbr.rel (0) target = $region17
    $region16: #{tpu_custom_call.1} parent=1 // pred_region
      %35 = dma.done [#allocation4], 32
    $region17: #{tpu_custom_call.1} parent=1 // pred_fallthru
      _
    %36 = vsyncpa [#allocation3], 1
    %37 = vsyncpa [#allocation4], 1

</llo_original>
